<compile_context>
chip_gen: v6e
topology: v6e:2x2x1
jax: 0.10.0
libtpu: 0.0.40
codegen_flags: <defaults>
</compile_context>

<pallas_src>
import functools
import math

import jax
import jax.numpy as jnp
from jax import lax
from jax.experimental import pallas as pl
from jax.experimental.pallas import tpu as pltpu


def _association_kernel(q_ref, k_ref, v_ref, o_ref, *, scale, num_heads,
                        e_dim, d_dim):
    # q_ref: (GB, TL, H*E), k_ref: (GB, S, H*E), v_ref: (GB, S, H*D),
    # o_ref: (GB, TL, H*D)
    out_heads = []
    for h in range(num_heads):
        # Slice per-head directly from the refs: only this head's data is
        # live in vregs (bounds live ranges, avoids spilling full tiles).
        q_h = q_ref[:, :, h * e_dim:(h + 1) * e_dim]   # (GB, TL, E)
        k_h = k_ref[:, :, h * e_dim:(h + 1) * e_dim]   # (GB, S,  E)
        v_h = v_ref[:, :, h * d_dim:(h + 1) * d_dim]   # (GB, S,  D)

        # Fold scale into Q (L*E elements, cheaper than scaling L*S scores),
        # then feed bf16 operands to the MXU with f32 accumulation.
        q_h = (q_h * jnp.asarray(scale, dtype=q_h.dtype)).astype(jnp.bfloat16)
        k_h = k_h.astype(jnp.bfloat16)

        # scores = (scale*Q) . K^T  -> (GB, TL, S); contraction on lane-major
        # E axis, batch over GB (no explicit transpose of K).
        scores = lax.dot_general(
            q_h, k_h,
            dimension_numbers=(((2,), (2,)), ((0,), (0,))),
            preferred_element_type=jnp.float32)

        # Numerically-stable softmax along S (f32 math; normalization folded
        # after the PV matmul since D <= S typically).
        m = jnp.max(scores, axis=-1, keepdims=True)
        p = jnp.exp(scores - m)                                  # (GB, TL, S)
        denom = jnp.sum(p, axis=-1, keepdims=True)               # (GB, TL, 1)

        out_h = lax.dot_general(
            p.astype(jnp.bfloat16), v_h.astype(jnp.bfloat16),
            dimension_numbers=(((2,), (1,)), ((0,), (0,))),
            preferred_element_type=jnp.float32)                  # (GB, TL, D)
        out_h = out_h * pl.reciprocal(denom, approx=True)
        out_heads.append(out_h)

    # Single lane-dense (full H*D width) store per grid step.
    o_ref[...] = jnp.concatenate(out_heads, axis=-1).astype(o_ref.dtype)


def _pick_l_tile(L, target=128):
    """Largest divisor of L that is <= target and sublane-aligned (or L)."""
    if L <= target:
        return L
    for t in range(min(target, L), 0, -1):
        if L % t == 0 and (t % 8 == 0 or t == L):
            return t
    return L


def association(queries, keys, values, scale=None):
    """queries: (B, L, H, E), keys: (B, S, H, E), values: (B, S, H, D)."""
    B, L, H, E = queries.shape
    _, S, _, D = values.shape
    if scale is None:
        scale = 1.0 / math.sqrt(E)

    # Free reshapes (merge trailing contiguous dims) -- no transposes, no
    # extra HBM traffic.  Kernel works head-packed along the lane dim.
    q = queries.reshape(B, L, H * E)
    k = keys.reshape(B, S, H * E)
    v = values.reshape(B, S, H * D)

    # Generation-aware VMEM budgeting.  v7x has 64 MiB physical VMEM per TC;
    # v5e / v6e have 128 MiB (v5e's *scoped* default is only 16 MiB, so we
    # always set vmem_limit_bytes explicitly).
    try:
        vmem_cap = pltpu.get_tpu_info().vmem_capacity_bytes
    except Exception:  # pragma: no cover - defensive default
        vmem_cap = 64 * 1024 * 1024
    if vmem_cap >= 100 * 1024 * 1024:      # v5e / v6e class (128 MiB)
        budget = 28 * 1024 * 1024
        vmem_limit = 96 * 1024 * 1024
    else:                                   # v7x class (64 MiB)
        budget = 10 * 1024 * 1024
        vmem_limit = 40 * 1024 * 1024

    tl = _pick_l_tile(L)

    # Per-batch-element per-step footprint: q/out blocks use the L tile,
    # k/v blocks the full S, plus ~2 f32 (TL, S) softmax intermediates for
    # the single live head (scores + p) and the bf16 matmul operand copies.
    itemsize = jnp.dtype(queries.dtype).itemsize
    per_b = ((tl + S) * H * E + S * H * D + tl * H * D) * itemsize \
        + 2 * tl * S * 4 + (tl * E + S * E + S * D) * 2
    gb = max(1, min(B, budget // max(per_b, 1)))
    while B % gb:
        gb -= 1

    if 2 * gb * per_b > vmem_limit:
        # TODO(synk): flash-style tiled-S fallback for very large footprints.
        raise ValueError(
            "Association kernel block footprint exceeds the VMEM budget; "
            "a tiled-S (flash-style) fallback is required for these shapes.")

    kernel = functools.partial(_association_kernel, scale=scale,
                               num_heads=H, e_dim=E, d_dim=D)

    out = pl.pallas_call(
        kernel,
        out_shape=jax.ShapeDtypeStruct((B, L, H * D), queries.dtype),
        grid_spec=pltpu.PrefetchScalarGridSpec(
            num_scalar_prefetch=0,
            grid=(B // gb, L // tl),
            in_specs=[
                # Q / output tiled over batch and L.
                pl.BlockSpec((gb, tl, H * E), lambda i, l: (i, l, 0)),
                # K / V depend only on the batch index -> stay resident
                # across consecutive L-iterations (no re-DMA).
                pl.BlockSpec((gb, S, H * E), lambda i, l: (i, 0, 0)),
                pl.BlockSpec((gb, S, H * D), lambda i, l: (i, 0, 0)),
            ],
            out_specs=pl.BlockSpec((gb, tl, H * D), lambda i, l: (i, l, 0)),
        ),
        compiler_params=pltpu.CompilerParams(
            dimension_semantics=("parallel", "parallel"),
            vmem_limit_bytes=vmem_limit,
        ),
    )(q, k, v)

    # Free split of the trailing dim back to PyTorch's (B, L, H, D).
    return out.reshape(B, L, H, D)


def _association_ref(queries, keys, values, scale=None):
    B, L, H, E = queries.shape
    if scale is None:
        scale = 1.0 / math.sqrt(E)
    scores = jnp.einsum('blhe,bshe->bhls', queries, keys)
    a = jax.nn.softmax(scale * scores, axis=-1)
    return jnp.einsum('bhls,bshd->blhd', a, values)


if __name__ == "__main__":
    B, L, S, H, E, D = 2, 16, 16, 2, 32, 32
    key = jax.random.PRNGKey(0)
    kq, kk, kv = jax.random.split(key, 3)
    queries = jax.random.normal(kq, (B, L, H, E), dtype=jnp.float32)
    keys = jax.random.normal(kk, (B, S, H, E), dtype=jnp.float32)
    values = jax.random.normal(kv, (B, S, H, D), dtype=jnp.float32)

    out = association(queries, keys, values)
    out = jax.block_until_ready(out)

    ref = _association_ref(queries, keys, values)
    assert out.shape == (B, L, H, D)
    # Tolerance accounts for bf16 MXU operands + approx reciprocal.
    assert jnp.allclose(out, ref, atol=2e-2, rtol=2e-2), "mismatch vs reference"

    print("KERNEL_OK")
</pallas_src>

<mosaic_0001>
module attributes {stable_mosaic.version = 11 : i64} {
  func.func @_association_kernel(%arg0: i32, %arg1: i32, %arg2: memref<2x16x64xf32, #tpu.memory_space<vmem>>, %arg3: memref<2x16x64xf32, #tpu.memory_space<vmem>>, %arg4: memref<2x16x64xf32, #tpu.memory_space<vmem>>, %arg5: memref<2x16x64xf32, #tpu.memory_space<vmem>>) attributes {dimension_semantics = [#tpu.dimension_semantics<parallel>, #tpu.dimension_semantics<parallel>], iteration_bounds = array<i64: 1, 1>, scalar_prefetch = 0 : i64, scratch_operands = 0 : i64, tpu.core_type = #tpu.core_type<tc>, window_params = [{transform_indices = @transform_0, window_bounds = array<i64: 2, 16, 64>}, {transform_indices = @transform_1, window_bounds = array<i64: 2, 16, 64>}, {transform_indices = @transform_2, window_bounds = array<i64: 2, 16, 64>}, {transform_indices = @transform_3, window_bounds = array<i64: 2, 16, 64>}]} {
    %c0 = arith.constant 0 : index
    %c0_0 = arith.constant 0 : index
    %c0_1 = arith.constant 0 : index
    %0 = vector.load %arg2[%c0, %c0_0, %c0_1] : memref<2x16x64xf32, #tpu.memory_space<vmem>>, vector<2x16x32xf32>
    %c0_2 = arith.constant 0 : index
    %c0_3 = arith.constant 0 : index
    %c0_4 = arith.constant 0 : index
    %1 = vector.load %arg3[%c0_2, %c0_3, %c0_4] : memref<2x16x64xf32, #tpu.memory_space<vmem>>, vector<2x16x32xf32>
    %c0_5 = arith.constant 0 : index
    %c0_6 = arith.constant 0 : index
    %c0_7 = arith.constant 0 : index
    %2 = vector.load %arg4[%c0_5, %c0_6, %c0_7] : memref<2x16x64xf32, #tpu.memory_space<vmem>>, vector<2x16x32xf32>
    %cst = arith.constant 0.176776692 : f32
    %3 = vector.broadcast %cst : f32 to vector<2x16x32xf32>
    %4 = arith.mulf %0, %3 : vector<2x16x32xf32>
    %5 = arith.truncf %4 : vector<2x16x32xf32> to vector<2x16x32xbf16>
    %6 = arith.truncf %1 : vector<2x16x32xf32> to vector<2x16x32xbf16>
    %cst_8 = arith.constant dense<0.000000e+00> : vector<2x16x16xf32>
    %7 = tpu.matmul %5, %6, %cst_8 {dimension_numbers = #tpu.dot_dimension_numbers<[2], [2], [1], [1], [0, 0, 0, 1, 1, 1], [0], [0]>} : vector<2x16x32xbf16>, vector<2x16x32xbf16>, vector<2x16x16xf32> -> vector<2x16x16xf32>
    %cst_9 = arith.constant dense<0xFF800000> : vector<2x16xf32>
    %8 = vector.multi_reduction <maximumf>, %7, %cst_9 [2] : vector<2x16x16xf32> to vector<2x16xf32>
    %9 = vector.shape_cast %8 : vector<2x16xf32> to vector<2x16x1xf32>
    %10 = vector.broadcast %9 : vector<2x16x1xf32> to vector<2x16x16xf32>
    %11 = arith.subf %7, %10 : vector<2x16x16xf32>
    %12 = math.exp %11 : vector<2x16x16xf32>
    %cst_10 = arith.constant dense<0.000000e+00> : vector<2x16xf32>
    %13 = vector.multi_reduction <add>, %12, %cst_10 [2] : vector<2x16x16xf32> to vector<2x16xf32>
    %14 = vector.shape_cast %13 : vector<2x16xf32> to vector<2x16x1xf32>
    %15 = arith.truncf %12 : vector<2x16x16xf32> to vector<2x16x16xbf16>
    %16 = arith.truncf %2 : vector<2x16x32xf32> to vector<2x16x32xbf16>
    %cst_11 = arith.constant dense<0.000000e+00> : vector<2x16x32xf32>
    %17 = tpu.matmul %15, %16, %cst_11 {dimension_numbers = #tpu.dot_dimension_numbers<[2], [1], [1], [2], [0, 0, 0, 1, 1, 2], [0], [0]>} : vector<2x16x16xbf16>, vector<2x16x32xbf16>, vector<2x16x32xf32> -> vector<2x16x32xf32>
    %18 = tpu.reciprocal %14 {approx = true} : vector<2x16x1xf32> -> vector<2x16x1xf32>
    %19 = vector.broadcast %18 : vector<2x16x1xf32> to vector<2x16x32xf32>
    %20 = arith.mulf %17, %19 : vector<2x16x32xf32>
    %c0_12 = arith.constant 0 : index
    %c0_13 = arith.constant 0 : index
    %c32 = arith.constant 32 : index
    %21 = vector.load %arg2[%c0_12, %c0_13, %c32] : memref<2x16x64xf32, #tpu.memory_space<vmem>>, vector<2x16x32xf32>
    %c0_14 = arith.constant 0 : index
    %c0_15 = arith.constant 0 : index
    %c32_16 = arith.constant 32 : index
    %22 = vector.load %arg3[%c0_14, %c0_15, %c32_16] : memref<2x16x64xf32, #tpu.memory_space<vmem>>, vector<2x16x32xf32>
    %c0_17 = arith.constant 0 : index
    %c0_18 = arith.constant 0 : index
    %c32_19 = arith.constant 32 : index
    %23 = vector.load %arg4[%c0_17, %c0_18, %c32_19] : memref<2x16x64xf32, #tpu.memory_space<vmem>>, vector<2x16x32xf32>
    %cst_20 = arith.constant 0.176776692 : f32
    %24 = vector.broadcast %cst_20 : f32 to vector<2x16x32xf32>
    %25 = arith.mulf %21, %24 : vector<2x16x32xf32>
    %26 = arith.truncf %25 : vector<2x16x32xf32> to vector<2x16x32xbf16>
    %27 = arith.truncf %22 : vector<2x16x32xf32> to vector<2x16x32xbf16>
    %cst_21 = arith.constant dense<0.000000e+00> : vector<2x16x16xf32>
    %28 = tpu.matmul %26, %27, %cst_21 {dimension_numbers = #tpu.dot_dimension_numbers<[2], [2], [1], [1], [0, 0, 0, 1, 1, 1], [0], [0]>} : vector<2x16x32xbf16>, vector<2x16x32xbf16>, vector<2x16x16xf32> -> vector<2x16x16xf32>
    %cst_22 = arith.constant dense<0xFF800000> : vector<2x16xf32>
    %29 = vector.multi_reduction <maximumf>, %28, %cst_22 [2] : vector<2x16x16xf32> to vector<2x16xf32>
    %30 = vector.shape_cast %29 : vector<2x16xf32> to vector<2x16x1xf32>
    %31 = vector.broadcast %30 : vector<2x16x1xf32> to vector<2x16x16xf32>
    %32 = arith.subf %28, %31 : vector<2x16x16xf32>
    %33 = math.exp %32 : vector<2x16x16xf32>
    %cst_23 = arith.constant dense<0.000000e+00> : vector<2x16xf32>
    %34 = vector.multi_reduction <add>, %33, %cst_23 [2] : vector<2x16x16xf32> to vector<2x16xf32>
    %35 = vector.shape_cast %34 : vector<2x16xf32> to vector<2x16x1xf32>
    %36 = arith.truncf %33 : vector<2x16x16xf32> to vector<2x16x16xbf16>
    %37 = arith.truncf %23 : vector<2x16x32xf32> to vector<2x16x32xbf16>
    %cst_24 = arith.constant dense<0.000000e+00> : vector<2x16x32xf32>
    %38 = tpu.matmul %36, %37, %cst_24 {dimension_numbers = #tpu.dot_dimension_numbers<[2], [1], [1], [2], [0, 0, 0, 1, 1, 2], [0], [0]>} : vector<2x16x16xbf16>, vector<2x16x32xbf16>, vector<2x16x32xf32> -> vector<2x16x32xf32>
    %39 = tpu.reciprocal %35 {approx = true} : vector<2x16x1xf32> -> vector<2x16x1xf32>
    %40 = vector.broadcast %39 : vector<2x16x1xf32> to vector<2x16x32xf32>
    %41 = arith.mulf %38, %40 : vector<2x16x32xf32>
    %42 = tpu.concatenate %20, %41 in 2 : vector<2x16x32xf32>, vector<2x16x32xf32> -> vector<2x16x64xf32>
    %c0_25 = arith.constant 0 : index
    %c0_26 = arith.constant 0 : index
    %c0_27 = arith.constant 0 : index
    %43 = vector.load %arg5[%c0_25, %c0_26, %c0_27] : memref<2x16x64xf32, #tpu.memory_space<vmem>>, vector<2x16x64xf32>
    tpu.vector_store %arg5[%c0_25, %c0_26, %c0_27], %42 {strides = array<i32>} : memref<2x16x64xf32, #tpu.memory_space<vmem>>, vector<2x16x64xf32>,
    return
  }
  func.func @transform_0(%arg0: i32, %arg1: i32) -> (i32, i32, i32) {
    %c0_i32 = arith.constant 0 : i32
    %c0_i32_0 = arith.constant 0 : i32
    return %arg0, %arg1, %c0_i32 : i32, i32, i32
  }
  func.func @transform_1(%arg0: i32, %arg1: i32) -> (i32, i32, i32) {
    %c0_i32 = arith.constant 0 : i32
    %c0_i32_0 = arith.constant 0 : i32
    %c0_i32_1 = arith.constant 0 : i32
    return %arg0, %c0_i32, %c0_i32_0 : i32, i32, i32
  }
  func.func @transform_2(%arg0: i32, %arg1: i32) -> (i32, i32, i32) {
    %c0_i32 = arith.constant 0 : i32
    %c0_i32_0 = arith.constant 0 : i32
    %c0_i32_1 = arith.constant 0 : i32
    return %arg0, %c0_i32, %c0_i32_0 : i32, i32, i32
  }
  func.func @transform_3(%arg0: i32, %arg1: i32) -> (i32, i32, i32) {
    %c0_i32 = arith.constant 0 : i32
    %c0_i32_0 = arith.constant 0 : i32
    return %arg0, %arg1, %c0_i32 : i32, i32, i32
  }
}

</mosaic_0001>

<llo_original>
// kernel: tpu_custom_call.1
$region0: #{tpu_custom_call.1}
  #allocation0 [shape = 'u32[]', space=smem, size = 0x4, offset = 0x4, fixed_abs, tag = 'smem constant byte address 0x4 - core index']
  #allocation1 [shape = 'u32[144,128]{1,0:T(1,128)}', space=vmem, size = 0x12000, scoped, tag = 'internal scratch']
  %s0 = inlined_call_operand.hbm [shape: f32[2,16,64], index: 0, kind: input, shape index: {}]
  %s1 = inlined_call_operand.hbm [shape: f32[2,16,64], index: 1, kind: input, shape index: {}]
  %s2 = inlined_call_operand.hbm [shape: f32[2,16,64], index: 2, kind: input, shape index: {}]
  %s3 = inlined_call_operand.hbm [shape: f32[2,16,64], index: 3, kind: output, shape index: {}]
  %s4 = sld [smem:[#allocation0]]
  $region34: #{tpu_custom_call.1} parent=0
    _
  %s6 = ssub.s32 1, %s4
  %s7 = scalar_select 0, %s6, %s4
  $region1: #{tpu_custom_call.1} parent=0
    #allocation2 [shape = 'u8[16384]{0}', space=vmem, size = 0x4000, scoped, tag = 'input window, operand 0, single buffered']
    #allocation3 [shape = 's32[1]{0}', space=sflag, size = 0x4, scoped, tag = 'scoped memory for tpu_custom_call.1']
    #allocation4 [shape = 's32[1]{0}', space=sflag, size = 0x4, scoped, tag = 'scoped memory for tpu_custom_call.1']
    #allocation5 [shape = 'u8[16384]{0}', space=vmem, size = 0x4000, scoped, tag = 'input window, operand 1, single buffered']
    #allocation6 [shape = 's32[1]{0}', space=sflag, size = 0x4, scoped, tag = 'scoped memory for tpu_custom_call.1']
    #allocation7 [shape = 'u8[16384]{0}', space=vmem, size = 0x4000, scoped, tag = 'input window, operand 2, single buffered']
    #allocation8 [shape = 'u8[16384]{0}', space=vmem, size = 0x4000, scoped, tag = 'output window, operand 0, single buffered']
    %8 = vsyncpa [#allocation3], 0
    %9 = vsyncpa [#allocation6], 0
    %10 = vsyncpa [#allocation4], 0
    // Predicated region
    $region2: #{tpu_custom_call.1} parent=1 // pred_check
      _
    $region3: #{tpu_custom_call.1} parent=1 // pred_check_branch
      %12 = sbr.rel (0) target = $region5
    $region4: #{tpu_custom_call.1} parent=1 // pred_region
      %s14 = ssub.s32 512, 512
      %15 = vsyncadd [#allocation3], %s14
      %s16 = sshll.u32 [#allocation2], 4
      %s17 = int_to_ptr.vmem [resolvable:$true] %s16
      %22 = dma.hbm_to_vmem [thread:$0]  %s0, 512, %s17, [#allocation3], 128, 128, 8
    $region5: #{tpu_custom_call.1} parent=1 // pred_fallthru
      _
    // Predicated region
    $region6: #{tpu_custom_call.1} parent=1 // pred_check
      _
    $region7: #{tpu_custom_call.1} parent=1 // pred_check_branch
      %24 = sbr.rel (0) target = $region9
    $region8: #{tpu_custom_call.1} parent=1 // pred_region
      %s26 = ssub.s32 512, 512
      %27 = vsyncadd [#allocation6], %s26
      %s28 = sshll.u32 [#allocation5], 4
      %s29 = int_to_ptr.vmem [resolvable:$true] %s28
      %34 = dma.hbm_to_vmem [thread:$0]  %s1, 512, %s29, [#allocation6], 128, 128, 8
    $region9: #{tpu_custom_call.1} parent=1 // pred_fallthru
      _
    // Predicated region
    $region10: #{tpu_custom_call.1} parent=1 // pred_check
      _
    $region11: #{tpu_custom_call.1} parent=1 // pred_check_branch
      %36 = sbr.rel (0) target = $region13
    $region12: #{tpu_custom_call.1} parent=1 // pred_region
      %s38 = ssub.s32 512, 512
      %39 = vsyncadd [#allocation6], %s38
      %s40 = sshll.u32 [#allocation7], 4
      %s41 = int_to_ptr.vmem [resolvable:$true] %s40
      %46 = dma.hbm_to_vmem [thread:$0]  %s2, 512, %s41, [#allocation6], 128, 128, 8
    $region13: #{tpu_custom_call.1} parent=1 // pred_fallthru
      _
    // Predicated region
    $region14: #{tpu_custom_call.1} parent=1 // pred_check
      _
    $region15: #{tpu_custom_call.1} parent=1 // pred_check_branch
      %48 = sbr.rel (0) target = $region17
    $region16: #{tpu_custom_call.1} parent=1 // pred_region
      %49 = dma.done [#allocation3], 512
    $region17: #{tpu_custom_call.1} parent=1 // pred_fallthru
      _
    // Predicated region
    $region18: #{tpu_custom_call.1} parent=1 // pred_check
      _
    $region19: #{tpu_custom_call.1} parent=1 // pred_check_branch
      %51 = sbr.rel (0) target = $region21
    $region20: #{tpu_custom_call.1} parent=1 // pred_region
      %52 = dma.done [#allocation6], 512
    $region21: #{tpu_custom_call.1} parent=1 // pred_fallthru
      _
    // Predicated region
    $region22: #{tpu_custom_call.1} parent=1 // pred_check
      _
    $region23: #{tpu_custom_call.1} parent=1 // pred_check_branch
      %54 = sbr.rel (0) target = $region25
    $region24: #{tpu_custom_call.1} parent=1 // pred_region
      %55 = dma.done [#allocation6], 512
    $region25: #{tpu_custom_call.1} parent=1 // pred_fallthru
      _
    %v57 = vld [vmem:[#allocation2] sm:$0xff]
    %v58 = vld [vmem:[#allocation2 + $0x8] sm:$0xff]
    %v59 = vld [vmem:[#allocation2 + $0x10] sm:$0xff]
    %v60 = vld [vmem:[#allocation2 + $0x18] sm:$0xff]
    %v61 = vld [vmem:[#allocation5] sm:$0xff]
    %v62 = vld [vmem:[#allocation5 + $0x8] sm:$0xff]
    %v63 = vld [vmem:[#allocation5 + $0x10] sm:$0xff]
    %v64 = vld [vmem:[#allocation5 + $0x18] sm:$0xff]
    %v65 = vld [vmem:[#allocation7] sm:$0xff]
    %v66 = vld [vmem:[#allocation7 + $0x8] sm:$0xff]
    %v67 = vld [vmem:[#allocation7 + $0x10] sm:$0xff]
    %v68 = vld [vmem:[#allocation7 + $0x18] sm:$0xff]
    %v69 = vmul.f32 %v57, 0.17677669
    %v70 = vmul.f32 %v58, 0.17677669
    %v71 = vmul.f32 %v59, 0.17677669
    %v72 = vmul.f32 %v60, 0.17677669
    %v73 = vpack.c.bf16 %v70, %v69
    %v74 = vpack.c.bf16 %v72, %v71
    %v75 = vpack.c.bf16 %v62, %v61
    %v76 = vpack.c.bf16 %v64, %v63
    %vm77 = vcmask 261120
    %v79 = vsel %vm77, %v73, 0
    %v82 = vsel %vm77, %v75, 0
    %84 = vmatprep.subr.bf16.mxu0 0
    %85 = vmatpush1.bf16.xpose.msra.mxu0 0
    %86 = vmatprep.subr.bf16.mxu0 0
    %87 = vmatpush1.bf16.xpose.msra.mxu0 0
    %88 = vmatprep.subr.bf16.mxu0 0
    %89 = vmatpush1.bf16.xpose.msra.mxu0 0
    %90 = vmatprep.subr.bf16.mxu0 0
    %91 = vmatpush1.bf16.xpose.msra.mxu0 0
    %92 = vmatprep.subr.bf16.mxu0 0
    %93 = vmatpush1.bf16.xpose.msra.mxu0 0
    %94 = vmatprep.subr.bf16.mxu0 0
    %95 = vmatpush1.bf16.xpose.msra.mxu0 0
    %96 = vmatprep.subr.bf16.mxu0 0
    %97 = vmatpush1.bf16.xpose.msra.mxu0 0
    %98 = vmatprep.subr.bf16.mxu0 0
    %99 = vmatpush1.bf16.xpose.msra.mxu0 %v82
    %100 = vmatprep.subr.bf16.mxu0 0
    %101 = vmatpush2.bf16.xpose.msra.mxu0 0
    %102 = vmatprep.subr.bf16.mxu0 0
    %103 = vmatpush2.bf16.xpose.msra.mxu0 0
    %104 = vmatprep.subr.bf16.mxu0 0
    %105 = vmatpush2.bf16.xpose.msra.mxu0 0
    %106 = vmatprep.subr.bf16.mxu0 0
    %107 = vmatpush2.bf16.xpose.msra.mxu0 0
    %108 = vmatprep.subr.bf16.mxu0 0
    %109 = vmatpush2.bf16.xpose.msra.mxu0 0
    %110 = vmatprep.subr.bf16.mxu0 0
    %111 = vmatpush2.bf16.xpose.msra.mxu0 0
    %112 = vmatprep.subr.bf16.mxu0 0
    %113 = vmatpush2.bf16.xpose.msra.mxu0 0
    %114 = vmatprep.subr.bf16.mxu0 0
    %115 = vmatpush2.bf16.xpose.msra.mxu0 0
    %116 = vmatprep.mubr.bf16.mxu0 0
    %117 = vmatmul.mubr.bf16.gmra.mxu0 %v79
    %v118 = vpop.f32.mrf.mxu0
    %v119 = vadd.f32 0.0, %v118
    %v120 = vpop.f32.mrf.mxu0
    %v121 = vpop.f32.mrf.mxu0
    %v122 = vadd.f32 0.0, %v121
    %v123 = vpop.f32.mrf.mxu0
    %124 = vdwg.mxu0
    %v126 = vsel %vm77, %v74, 0
    %v129 = vsel %vm77, %v76, 0
    %131 = vmatprep.subr.bf16.mxu0 0
    %132 = vmatpush1.bf16.xpose.msra.mxu0 0
    %133 = vmatprep.subr.bf16.mxu0 0
    %134 = vmatpush1.bf16.xpose.msra.mxu0 0
    %135 = vmatprep.subr.bf16.mxu0 0
    %136 = vmatpush1.bf16.xpose.msra.mxu0 0
    %137 = vmatprep.subr.bf16.mxu0 0
    %138 = vmatpush1.bf16.xpose.msra.mxu0 0
    %139 = vmatprep.subr.bf16.mxu0 0
    %140 = vmatpush1.bf16.xpose.msra.mxu0 0
    %141 = vmatprep.subr.bf16.mxu0 0
    %142 = vmatpush1.bf16.xpose.msra.mxu0 0
    %143 = vmatprep.subr.bf16.mxu0 0
    %144 = vmatpush1.bf16.xpose.msra.mxu0 0
    %145 = vmatprep.subr.bf16.mxu0 0
    %146 = vmatpush1.bf16.xpose.msra.mxu0 %v129
    %147 = vmatprep.subr.bf16.mxu0 0
    %148 = vmatpush2.bf16.xpose.msra.mxu0 0
    %149 = vmatprep.subr.bf16.mxu0 0
    %150 = vmatpush2.bf16.xpose.msra.mxu0 0
    %151 = vmatprep.subr.bf16.mxu0 0
    %152 = vmatpush2.bf16.xpose.msra.mxu0 0
    %153 = vmatprep.subr.bf16.mxu0 0
    %154 = vmatpush2.bf16.xpose.msra.mxu0 0
    %155 = vmatprep.subr.bf16.mxu0 0
    %156 = vmatpush2.bf16.xpose.msra.mxu0 0
    %157 = vmatprep.subr.bf16.mxu0 0
    %158 = vmatpush2.bf16.xpose.msra.mxu0 0
    %159 = vmatprep.subr.bf16.mxu0 0
    %160 = vmatpush2.bf16.xpose.msra.mxu0 0
    %161 = vmatprep.subr.bf16.mxu0 0
    %162 = vmatpush2.bf16.xpose.msra.mxu0 0
    %163 = vmatprep.mubr.bf16.mxu0 0
    %164 = vmatmul.mubr.bf16.gmra.mxu0 %v126
    %v165 = vpop.f32.mrf.mxu0
    %v166 = vadd.f32 0.0, %v165
    %v167 = vpop.f32.mrf.mxu0
    %v168 = vpop.f32.mrf.mxu0
    %v169 = vadd.f32 0.0, %v168
    %v170 = vpop.f32.mrf.mxu0
    %171 = vdwg.mxu0
    %vm172 = vcmask 130048
    %v173 = vsel %vm172, %v119, -inf
    %174 = vmax.xlane.f32.xlu0 %v173
    %v175 = vpop.xlane.xlu0 %174
    %v176 = vsel %vm172, %v122, -inf
    %177 = vmax.xlane.f32.xlu0 %v176
    %v178 = vpop.xlane.xlu0 %177
    %v179 = vsel %vm172, %v166, -inf
    %180 = vmax.xlane.f32.xlu0 %v179
    %v181 = vpop.xlane.xlu0 %180
    %v182 = vsel %vm172, %v169, -inf
    %183 = vmax.xlane.f32.xlu0 %v182
    %v184 = vpop.xlane.xlu0 %183
    %v185 = vsub.f32 %v119, %v175
    %v186 = vsub.f32 %v122, %v178
    %v187 = vsub.f32 %v166, %v181
    %v188 = vsub.f32 %v169, %v184
    %v189 = vmul.f32 %v185, 1.442695
    %v190 = vpow.pop %v189
    %v191 = vmul.f32 %v186, 1.442695
    %v192 = vpow.pop %v191
    %v193 = vmul.f32 %v187, 1.442695
    %v194 = vpow.pop %v193
    %v195 = vmul.f32 %v188, 1.442695
    %v196 = vpow.pop %v195
    %v197 = vsel %vm172, %v190, 0.0
    %198 = vadd.xlane.f32.xlu0 %v197
    %v199 = vpop.xlane.xlu0 %198
    %v200 = vsel %vm172, %v192, 0.0
    %201 = vadd.xlane.f32.xlu0 %v200
    %v202 = vpop.xlane.xlu0 %201
    %v203 = vsel %vm172, %v194, 0.0
    %204 = vadd.xlane.f32.xlu0 %v203
    %v205 = vpop.xlane.xlu0 %204
    %v206 = vsel %vm172, %v196, 0.0
    %207 = vadd.xlane.f32.xlu0 %v206
    %v208 = vpop.xlane.xlu0 %207
    %v209 = vpack.c.bf16 %v192, %v190
    %v210 = vpack.c.bf16 %v196, %v194
    %v211 = vpack.c.bf16 %v66, %v65
    %v212 = vpack.c.bf16 %v68, %v67
    %v214 = vsel %vm172, %v209, 0
    %216 = vmatprep.subr.bf16.mxu0 0
    %217 = vmatpush1.bf16.msra.mxu0 0
    %218 = vmatprep.subr.bf16.mxu0 0
    %219 = vmatpush1.bf16.msra.mxu0 0
    %220 = vmatprep.subr.bf16.mxu0 0
    %221 = vmatpush1.bf16.msra.mxu0 0
    %222 = vmatprep.subr.bf16.mxu0 0
    %223 = vmatpush1.bf16.msra.mxu0 0
    %224 = vmatprep.subr.bf16.mxu0 0
    %225 = vmatpush1.bf16.msra.mxu0 0
    %226 = vmatprep.subr.bf16.mxu0 0
    %227 = vmatpush1.bf16.msra.mxu0 0
    %228 = vmatprep.subr.bf16.mxu0 0
    %229 = vmatpush1.bf16.msra.mxu0 0
    %230 = vmatprep.subr.bf16.mxu0 0
    %231 = vmatpush1.bf16.msra.mxu0 %v211
    %232 = vmatprep.subr.bf16.mxu0 0
    %233 = vmatpush2.bf16.msra.mxu0 0
    %234 = vmatprep.subr.bf16.mxu0 0
    %235 = vmatpush2.bf16.msra.mxu0 0
    %236 = vmatprep.subr.bf16.mxu0 0
    %237 = vmatpush2.bf16.msra.mxu0 0
    %238 = vmatprep.subr.bf16.mxu0 0
    %239 = vmatpush2.bf16.msra.mxu0 0
    %240 = vmatprep.subr.bf16.mxu0 0
    %241 = vmatpush2.bf16.msra.mxu0 0
    %242 = vmatprep.subr.bf16.mxu0 0
    %243 = vmatpush2.bf16.msra.mxu0 0
    %244 = vmatprep.subr.bf16.mxu0 0
    %245 = vmatpush2.bf16.msra.mxu0 0
    %246 = vmatprep.subr.bf16.mxu0 0
    %247 = vmatpush2.bf16.msra.mxu0 0
    %248 = vmatprep.mubr.bf16.mxu0 0
    %249 = vmatmul.mubr.bf16.gmra.mxu0 %v214
    %v250 = vpop.f32.mrf.mxu0
    %v251 = vadd.f32 0.0, %v250
    %v252 = vpop.f32.mrf.mxu0
    %v253 = vpop.f32.mrf.mxu0
    %v254 = vadd.f32 0.0, %v253
    %v255 = vpop.f32.mrf.mxu0
    %256 = vdwg.mxu0
    %v258 = vsel %vm172, %v210, 0
    %260 = vmatprep.subr.bf16.mxu0 0
    %261 = vmatpush1.bf16.msra.mxu0 0
    %262 = vmatprep.subr.bf16.mxu0 0
    %263 = vmatpush1.bf16.msra.mxu0 0
    %264 = vmatprep.subr.bf16.mxu0 0
    %265 = vmatpush1.bf16.msra.mxu0 0
    %266 = vmatprep.subr.bf16.mxu0 0
    %267 = vmatpush1.bf16.msra.mxu0 0
    %268 = vmatprep.subr.bf16.mxu0 0
    %269 = vmatpush1.bf16.msra.mxu0 0
    %270 = vmatprep.subr.bf16.mxu0 0
    %271 = vmatpush1.bf16.msra.mxu0 0
    %272 = vmatprep.subr.bf16.mxu0 0
    %273 = vmatpush1.bf16.msra.mxu0 0
    %274 = vmatprep.subr.bf16.mxu0 0
    %275 = vmatpush1.bf16.msra.mxu0 %v212
    %276 = vmatprep.subr.bf16.mxu0 0
    %277 = vmatpush2.bf16.msra.mxu0 0
    %278 = vmatprep.subr.bf16.mxu0 0
    %279 = vmatpush2.bf16.msra.mxu0 0
    %280 = vmatprep.subr.bf16.mxu0 0
    %281 = vmatpush2.bf16.msra.mxu0 0
    %282 = vmatprep.subr.bf16.mxu0 0
    %283 = vmatpush2.bf16.msra.mxu0 0
    %284 = vmatprep.subr.bf16.mxu0 0
    %285 = vmatpush2.bf16.msra.mxu0 0
    %286 = vmatprep.subr.bf16.mxu0 0
    %287 = vmatpush2.bf16.msra.mxu0 0
    %288 = vmatprep.subr.bf16.mxu0 0
    %289 = vmatpush2.bf16.msra.mxu0 0
    %290 = vmatprep.subr.bf16.mxu0 0
    %291 = vmatpush2.bf16.msra.mxu0 0
    %292 = vmatprep.mubr.bf16.mxu0 0
    %293 = vmatmul.mubr.bf16.gmra.mxu0 %v258
    %v294 = vpop.f32.mrf.mxu0
    %v295 = vadd.f32 0.0, %v294
    %v296 = vpop.f32.mrf.mxu0
    %v297 = vpop.f32.mrf.mxu0
    %v298 = vadd.f32 0.0, %v297
    %v299 = vpop.f32.mrf.mxu0
    %300 = vdwg.mxu0
    %v301 = vrcp.pop %v199
    %v302 = vrcp.pop %v202
    %v303 = vrcp.pop %v205
    %v304 = vrcp.pop %v208
    %v305 = vmul.f32 %v251, %v301
    %v306 = vmul.f32 %v254, %v302
    %v307 = vmul.f32 %v295, %v303
    %v308 = vmul.f32 %v298, %v304
    %310 = vrot.lane.b32.xlu0 %v73, 96
    %v311 = vpop.permute.xlu0 %310
    %313 = vrot.lane.b32.xlu0 %v75, 96
    %v314 = vpop.permute.xlu0 %313
    %v316 = vsel %vm77, %v311, 0
    %v319 = vsel %vm77, %v314, 0
    %321 = vmatprep.subr.bf16.mxu0 0
    %322 = vmatpush1.bf16.xpose.msra.mxu0 0
    %323 = vmatprep.subr.bf16.mxu0 0
    %324 = vmatpush1.bf16.xpose.msra.mxu0 0
    %325 = vmatprep.subr.bf16.mxu0 0
    %326 = vmatpush1.bf16.xpose.msra.mxu0 0
    %327 = vmatprep.subr.bf16.mxu0 0
    %328 = vmatpush1.bf16.xpose.msra.mxu0 0
    %329 = vmatprep.subr.bf16.mxu0 0
    %330 = vmatpush1.bf16.xpose.msra.mxu0 0
    %331 = vmatprep.subr.bf16.mxu0 0
    %332 = vmatpush1.bf16.xpose.msra.mxu0 0
    %333 = vmatprep.subr.bf16.mxu0 0
    %334 = vmatpush1.bf16.xpose.msra.mxu0 0
    %335 = vmatprep.subr.bf16.mxu0 0
    %336 = vmatpush1.bf16.xpose.msra.mxu0 %v319
    %337 = vmatprep.subr.bf16.mxu0 0
    %338 = vmatpush2.bf16.xpose.msra.mxu0 0
    %339 = vmatprep.subr.bf16.mxu0 0
    %340 = vmatpush2.bf16.xpose.msra.mxu0 0
    %341 = vmatprep.subr.bf16.mxu0 0
    %342 = vmatpush2.bf16.xpose.msra.mxu0 0
    %343 = vmatprep.subr.bf16.mxu0 0
    %344 = vmatpush2.bf16.xpose.msra.mxu0 0
    %345 = vmatprep.subr.bf16.mxu0 0
    %346 = vmatpush2.bf16.xpose.msra.mxu0 0
    %347 = vmatprep.subr.bf16.mxu0 0
    %348 = vmatpush2.bf16.xpose.msra.mxu0 0
    %349 = vmatprep.subr.bf16.mxu0 0
    %350 = vmatpush2.bf16.xpose.msra.mxu0 0
    %351 = vmatprep.subr.bf16.mxu0 0
    %352 = vmatpush2.bf16.xpose.msra.mxu0 0
    %353 = vmatprep.mubr.bf16.mxu0 0
    %354 = vmatmul.mubr.bf16.gmra.mxu0 %v316
    %v355 = vpop.f32.mrf.mxu0
    %v356 = vadd.f32 0.0, %v355
    %v357 = vpop.f32.mrf.mxu0
    %v358 = vpop.f32.mrf.mxu0
    %v359 = vadd.f32 0.0, %v358
    %v360 = vpop.f32.mrf.mxu0
    %361 = vdwg.mxu0
    %363 = vrot.lane.b32.xlu0 %v74, 96
    %v364 = vpop.permute.xlu0 %363
    %366 = vrot.lane.b32.xlu0 %v76, 96
    %v367 = vpop.permute.xlu0 %366
    %v369 = vsel %vm77, %v364, 0
    %v372 = vsel %vm77, %v367, 0
    %374 = vmatprep.subr.bf16.mxu0 0
    %375 = vmatpush1.bf16.xpose.msra.mxu0 0
    %376 = vmatprep.subr.bf16.mxu0 0
    %377 = vmatpush1.bf16.xpose.msra.mxu0 0
    %378 = vmatprep.subr.bf16.mxu0 0
    %379 = vmatpush1.bf16.xpose.msra.mxu0 0
    %380 = vmatprep.subr.bf16.mxu0 0
    %381 = vmatpush1.bf16.xpose.msra.mxu0 0
    %382 = vmatprep.subr.bf16.mxu0 0
    %383 = vmatpush1.bf16.xpose.msra.mxu0 0
    %384 = vmatprep.subr.bf16.mxu0 0
    %385 = vmatpush1.bf16.xpose.msra.mxu0 0
    %386 = vmatprep.subr.bf16.mxu0 0
    %387 = vmatpush1.bf16.xpose.msra.mxu0 0
    %388 = vmatprep.subr.bf16.mxu0 0
    %389 = vmatpush1.bf16.xpose.msra.mxu0 %v372
    %390 = vmatprep.subr.bf16.mxu0 0
    %391 = vmatpush2.bf16.xpose.msra.mxu0 0
    %392 = vmatprep.subr.bf16.mxu0 0
    %393 = vmatpush2.bf16.xpose.msra.mxu0 0
    %394 = vmatprep.subr.bf16.mxu0 0
    %395 = vmatpush2.bf16.xpose.msra.mxu0 0
    %396 = vmatprep.subr.bf16.mxu0 0
    %397 = vmatpush2.bf16.xpose.msra.mxu0 0
    %398 = vmatprep.subr.bf16.mxu0 0
    %399 = vmatpush2.bf16.xpose.msra.mxu0 0
    %400 = vmatprep.subr.bf16.mxu0 0
    %401 = vmatpush2.bf16.xpose.msra.mxu0 0
    %402 = vmatprep.subr.bf16.mxu0 0
    %403 = vmatpush2.bf16.xpose.msra.mxu0 0
    %404 = vmatprep.subr.bf16.mxu0 0
    %405 = vmatpush2.bf16.xpose.msra.mxu0 0
    %406 = vmatprep.mubr.bf16.mxu0 0
    %407 = vmatmul.mubr.bf16.gmra.mxu0 %v369
    %v408 = vpop.f32.mrf.mxu0
    %v409 = vadd.f32 0.0, %v408
    %v410 = vpop.f32.mrf.mxu0
    %v411 = vpop.f32.mrf.mxu0
    %v412 = vadd.f32 0.0, %v411
    %v413 = vpop.f32.mrf.mxu0
    %414 = vdwg.mxu0
    %v415 = vsel %vm172, %v356, -inf
    %416 = vmax.xlane.f32.xlu0 %v415
    %v417 = vpop.xlane.xlu0 %416
    %v418 = vsel %vm172, %v359, -inf
    %419 = vmax.xlane.f32.xlu0 %v418
    %v420 = vpop.xlane.xlu0 %419
    %v421 = vsel %vm172, %v409, -inf
    %422 = vmax.xlane.f32.xlu0 %v421
    %v423 = vpop.xlane.xlu0 %422
    %v424 = vsel %vm172, %v412, -inf
    %425 = vmax.xlane.f32.xlu0 %v424
    %v426 = vpop.xlane.xlu0 %425
    %v427 = vsub.f32 %v356, %v417
    %v428 = vsub.f32 %v359, %v420
    %v429 = vsub.f32 %v409, %v423
    %v430 = vsub.f32 %v412, %v426
    %v431 = vmul.f32 %v427, 1.442695
    %v432 = vpow.pop %v431
    %v433 = vmul.f32 %v428, 1.442695
    %v434 = vpow.pop %v433
    %v435 = vmul.f32 %v429, 1.442695
    %v436 = vpow.pop %v435
    %v437 = vmul.f32 %v430, 1.442695
    %v438 = vpow.pop %v437
    %v439 = vsel %vm172, %v432, 0.0
    %440 = vadd.xlane.f32.xlu0 %v439
    %v441 = vpop.xlane.xlu0 %440
    %v442 = vsel %vm172, %v434, 0.0
    %443 = vadd.xlane.f32.xlu0 %v442
    %v444 = vpop.xlane.xlu0 %443
    %v445 = vsel %vm172, %v436, 0.0
    %446 = vadd.xlane.f32.xlu0 %v445
    %v447 = vpop.xlane.xlu0 %446
    %v448 = vsel %vm172, %v438, 0.0
    %449 = vadd.xlane.f32.xlu0 %v448
    %v450 = vpop.xlane.xlu0 %449
    %v451 = vpack.c.bf16 %v434, %v432
    %v452 = vpack.c.bf16 %v438, %v436
    %454 = vrot.lane.b32.xlu0 %v211, 96
    %v455 = vpop.permute.xlu0 %454
    %v458 = vsel %vm172, %v451, 0
    %460 = vmatprep.subr.bf16.mxu0 0
    %461 = vmatpush1.bf16.msra.mxu0 0
    %462 = vmatprep.subr.bf16.mxu0 0
    %463 = vmatpush1.bf16.msra.mxu0 0
    %464 = vmatprep.subr.bf16.mxu0 0
    %465 = vmatpush1.bf16.msra.mxu0 0
    %466 = vmatprep.subr.bf16.mxu0 0
    %467 = vmatpush1.bf16.msra.mxu0 0
    %468 = vmatprep.subr.bf16.mxu0 0
    %469 = vmatpush1.bf16.msra.mxu0 0
    %470 = vmatprep.subr.bf16.mxu0 0
    %471 = vmatpush1.bf16.msra.mxu0 0
    %472 = vmatprep.subr.bf16.mxu0 0
    %473 = vmatpush1.bf16.msra.mxu0 0
    %474 = vmatprep.subr.bf16.mxu0 0
    %475 = vmatpush1.bf16.msra.mxu0 %v455
    %476 = vmatprep.subr.bf16.mxu0 0
    %477 = vmatpush2.bf16.msra.mxu0 0
    %478 = vmatprep.subr.bf16.mxu0 0
    %479 = vmatpush2.bf16.msra.mxu0 0
    %480 = vmatprep.subr.bf16.mxu0 0
    %481 = vmatpush2.bf16.msra.mxu0 0
    %482 = vmatprep.subr.bf16.mxu0 0
    %483 = vmatpush2.bf16.msra.mxu0 0
    %484 = vmatprep.subr.bf16.mxu0 0
    %485 = vmatpush2.bf16.msra.mxu0 0
    %486 = vmatprep.subr.bf16.mxu0 0
    %487 = vmatpush2.bf16.msra.mxu0 0
    %488 = vmatprep.subr.bf16.mxu0 0
    %489 = vmatpush2.bf16.msra.mxu0 0
    %490 = vmatprep.subr.bf16.mxu0 0
    %491 = vmatpush2.bf16.msra.mxu0 0
    %492 = vmatprep.mubr.bf16.mxu0 0
    %493 = vmatmul.mubr.bf16.gmra.mxu0 %v458
    %v494 = vpop.f32.mrf.mxu0
    %v495 = vadd.f32 0.0, %v494
    %v496 = vpop.f32.mrf.mxu0
    %v497 = vpop.f32.mrf.mxu0
    %v498 = vadd.f32 0.0, %v497
    %v499 = vpop.f32.mrf.mxu0
    %500 = vdwg.mxu0
    %502 = vrot.lane.b32.xlu0 %v212, 96
    %v503 = vpop.permute.xlu0 %502
    %v506 = vsel %vm172, %v452, 0
    %508 = vmatprep.subr.bf16.mxu0 0
    %509 = vmatpush1.bf16.msra.mxu0 0
    %510 = vmatprep.subr.bf16.mxu0 0
    %511 = vmatpush1.bf16.msra.mxu0 0
    %512 = vmatprep.subr.bf16.mxu0 0
    %513 = vmatpush1.bf16.msra.mxu0 0
    %514 = vmatprep.subr.bf16.mxu0 0
    %515 = vmatpush1.bf16.msra.mxu0 0
    %516 = vmatprep.subr.bf16.mxu0 0
    %517 = vmatpush1.bf16.msra.mxu0 0
    %518 = vmatprep.subr.bf16.mxu0 0
    %519 = vmatpush1.bf16.msra.mxu0 0
    %520 = vmatprep.subr.bf16.mxu0 0
    %521 = vmatpush1.bf16.msra.mxu0 0
    %522 = vmatprep.subr.bf16.mxu0 0
    %523 = vmatpush1.bf16.msra.mxu0 %v503
    %524 = vmatprep.subr.bf16.mxu0 0
    %525 = vmatpush2.bf16.msra.mxu0 0
    %526 = vmatprep.subr.bf16.mxu0 0
    %527 = vmatpush2.bf16.msra.mxu0 0
    %528 = vmatprep.subr.bf16.mxu0 0
    %529 = vmatpush2.bf16.msra.mxu0 0
    %530 = vmatprep.subr.bf16.mxu0 0
    %531 = vmatpush2.bf16.msra.mxu0 0
    %532 = vmatprep.subr.bf16.mxu0 0
    %533 = vmatpush2.bf16.msra.mxu0 0
    %534 = vmatprep.subr.bf16.mxu0 0
    %535 = vmatpush2.bf16.msra.mxu0 0
    %536 = vmatprep.subr.bf16.mxu0 0
    %537 = vmatpush2.bf16.msra.mxu0 0
    %538 = vmatprep.subr.bf16.mxu0 0
    %539 = vmatpush2.bf16.msra.mxu0 0
    %540 = vmatprep.mubr.bf16.mxu0 0
    %541 = vmatmul.mubr.bf16.gmra.mxu0 %v506
    %v542 = vpop.f32.mrf.mxu0
    %v543 = vadd.f32 0.0, %v542
    %v544 = vpop.f32.mrf.mxu0
    %v545 = vpop.f32.mrf.mxu0
    %v546 = vadd.f32 0.0, %v545
    %v547 = vpop.f32.mrf.mxu0
    %548 = vdwg.mxu0
    %v549 = vrcp.pop %v441
    %v550 = vrcp.pop %v444
    %v551 = vrcp.pop %v447
    %v552 = vrcp.pop %v450
    %v553 = vmul.f32 %v495, %v549
    %v554 = vmul.f32 %v498, %v550
    %v555 = vmul.f32 %v543, %v551
    %v556 = vmul.f32 %v546, %v552
    %561 = vrot.lane.b32.xlu0 %v553, 32
    %v562 = vpop.permute.xlu0 %561
    %563 = vrot.lane.b32.xlu0 %v554, 32
    %v564 = vpop.permute.xlu0 %563
    %565 = vrot.lane.b32.xlu0 %v555, 32
    %v566 = vpop.permute.xlu0 %565
    %567 = vrot.lane.b32.xlu0 %v556, 32
    %v568 = vpop.permute.xlu0 %567
    %v573 = vsel %vm77, %v305, %v562
    %v574 = vsel %vm77, %v306, %v564
    %v575 = vsel %vm77, %v307, %v566
    %v576 = vsel %vm77, %v308, %v568
    %vm577 = vcmask 523264
    %578 = vst.msk [vmem:[#allocation8] sm:$0xff] %vm577, %v573
    %579 = vst.msk [vmem:[#allocation8 + $0x8] sm:$0xff] %vm577, %v574
    %580 = vst.msk [vmem:[#allocation8 + $0x10] sm:$0xff] %vm577, %v575
    %581 = vst.msk [vmem:[#allocation8 + $0x18] sm:$0xff] %vm577, %v576
    // Predicated region
    $region26: #{tpu_custom_call.1} parent=1 // pred_check
      _
    $region27: #{tpu_custom_call.1} parent=1 // pred_check_branch
      %583 = sbr.rel (0) target = $region29
    $region28: #{tpu_custom_call.1} parent=1 // pred_region
      %s585 = ssub.s32 512, 512
      %586 = vsyncadd [#allocation4], %s585
      %s587 = sshll.u32 [#allocation8], 4
      %s588 = int_to_ptr.vmem [resolvable:$true] %s587
      %593 = dma.vmem_to_hbm [thread:$0]  %s588, 512, %s3, [#allocation4], 128, 128, 8
    $region29: #{tpu_custom_call.1} parent=1 // pred_fallthru
      _
    // Predicated region
    $region30: #{tpu_custom_call.1} parent=1 // pred_check
      _
    $region31: #{tpu_custom_call.1} parent=1 // pred_check_branch
      %595 = sbr.rel (0) target = $region33
    $region32: #{tpu_custom_call.1} parent=1 // pred_region
      %596 = dma.done [#allocation4], 512
    $region33: #{tpu_custom_call.1} parent=1 // pred_fallthru
      _
    %597 = vsyncpa [#allocation3], 1
    %598 = vsyncpa [#allocation6], 1
    %599 = vsyncpa [#allocation4], 1

</llo_original>
